<compile_context>
chip_gen: v6e
topology: v6e:2x2x1
jax: 0.10.0
libtpu: 0.0.40
codegen_flags: <defaults>
</compile_context>

<pallas_src>
import math

import jax
import jax.numpy as jnp
from jax.experimental import pallas as pl
from jax.experimental.pallas import tpu as pltpu


def _round_up(x, m):
    return ((x + m - 1) // m) * m


def _vmem_cap_bytes():
    """Generation-aware scoped-VMEM cap (~3/4 of physical per-core VMEM)."""
    try:
        info = pltpu.get_tpu_info()
        phys = getattr(info, "vmem_capacity_bytes", None)
        if phys:
            return int(phys) * 3 // 4      # ~96 MiB on v5e/v6e, ~48 MiB on v7x
    except Exception:
        pass
    return 48 << 20                        # safe default on every generation


def adamm_agg_kernel(idx_ref, x_ref, w_ref, b_ref, o_ref, acc_ref):
    # idx_ref: (1, tE) int32   x_ref: (tE, Hp)
    # w_ref:   (Hp, Hp)  pre-transposed (in_features, out_features)
    # b_ref:   (1, Hp)         o_ref: (tN, Hp)   acc_ref: (tN, Hp) f32 scratch
    c = pl.program_id(0)          # E-partial / core split (parallel)
    n = pl.program_id(1)          # N tile                 (parallel)
    e = pl.program_id(2)          # E tile                 (reduction, last)

    @pl.when(e == 0)
    def _():
        acc_ref[...] = jnp.zeros_like(acc_ref)

    tN = acc_ref.shape[0]
    tE = idx_ref.shape[1]

    # One-hot scatter-sum on the MXU.  The N-tile offset is applied to the
    # (1, tE) index row (cheap) rather than to the (tN, tE) iota.
    local_idx = idx_ref[...] - n * tN                        # (1, tE) int32
    row_ids = jax.lax.broadcasted_iota(jnp.int32, (tN, tE), 0)
    onehot = (row_ids == local_idx).astype(x_ref.dtype)      # exact 0/1
    acc_ref[...] += jnp.dot(onehot, x_ref[...],
                            preferred_element_type=jnp.float32)

    @pl.when(e == pl.num_programs(2) - 1)
    def _():
        # Linear epilogue once per (c, n) tile; W is already (in, out) so this
        # is a natively-oriented MXU contraction.
        out = jnp.dot(acc_ref[...], w_ref[...],
                      preferred_element_type=jnp.float32)
        # Bias added only by partial c == 0 so the wrapper partial-sum is exact.
        out = out + jnp.where(c == 0, b_ref[...].astype(jnp.float32), 0.0)
        o_ref[...] = out.astype(o_ref.dtype)


def adamm_agg(x, index, w, b, num_segments, *, tile_e=512):
    """x: (E, H), index: (E,) int, w: (H, H) torch-Linear layout, b: (H,)
    -> (num_segments, H) = Linear(segment_sum(x, index))."""
    E, H = x.shape
    N = int(num_segments)

    Hp = _round_up(H, 128)
    itemsize_x = x.dtype.itemsize
    itemsize_w = w.dtype.itemsize
    itemsize_o = x.dtype.itemsize

    # ---- E tile: lane-dense; when x is already aligned pick a divisor of E so
    # x can be streamed straight from HBM without a wrapper-side pad copy.
    tile_e = max(128, _round_up(int(tile_e), 128))
    no_pad = (H == Hp) and (E % 128 == 0) and (math.gcd(E, tile_e) >= min(256, E))
    tE = math.gcd(E, tile_e) if no_pad else min(tile_e, _round_up(E, 128))

    # ---- N tile from the generation-aware VMEM budget.  Prefer a single N
    # tile (tN == Np) so x is streamed from HBM exactly once.
    cap = _vmem_cap_bytes()
    fixed = (2 * tE * Hp * itemsize_x        # double-buffered x tiles
             + 2 * 8 * tE * 4                # index tiles (8-sublane padded)
             + 2 * Hp * Hp * itemsize_w      # resident W (budgeted at 2 bufs)
             + 2 * 8 * Hp * 4                # bias
             + (4 << 20))                    # headroom / internal scratch
    per_row = Hp * (4 + 2 * itemsize_o) + tE * 12   # acc + out bufs + one-hot temps
    tn_budget = int(min(max(8, (cap - fixed) // per_row), 4096))

    Np8 = _round_up(N, 8)
    if Np8 <= tn_budget:
        tN = Np8
    else:
        tN = (tn_budget // 256) * 256 if tn_budget >= 256 else (tn_budget // 8) * 8
        tN = max(tN, 8)
    Np = _round_up(N, tN)
    grid_n = Np // tN

    # ---- Split the E (reduction) axis across a leading parallel axis when the
    # output fits a single N tile: on v7x this feeds both TensorCores; on
    # single-core chips it costs only a duplicate tiny epilogue + one XLA add.
    e_tiles = -(-E // tE)
    n_part = 2 if (grid_n == 1 and e_tiles >= 2) else 1
    if no_pad and (e_tiles % n_part) != 0:
        n_part = 1                            # keep the pad-free x path
    Ep = E if no_pad else _round_up(E, tE * n_part)
    e_tiles = Ep // tE
    grid_e = e_tiles // n_part

    # ---- Operand staging.  x is passed through untouched on the aligned path
    # (the pad copy is a full extra HBM read+write of x otherwise).
    if no_pad:
        x_in = x
        idx_in = index.astype(jnp.int32).reshape(1, E)
    else:
        x_in = jnp.zeros((Ep, Hp), x.dtype).at[:E, :H].set(x)
        # Padded edge slots get segment id -1 -> matches no row (x pad rows are 0).
        idx_in = jnp.full((1, Ep), -1, jnp.int32).at[0, :E].set(
            index.astype(jnp.int32))
    # W pre-transposed to (in_features, out_features): MXU-native RHS layout.
    w_t = jnp.zeros((Hp, Hp), w.dtype).at[:H, :H].set(w.T)
    b_row = jnp.zeros((1, Hp), b.dtype).at[0, :H].set(b)

    grid = (n_part, grid_n, grid_e)
    out_shape = jax.ShapeDtypeStruct((n_part, Np, Hp), x.dtype)

    cost = pl.CostEstimate(
        flops=int(2 * Np * Ep * Hp + n_part * 2 * Np * Hp * Hp),
        transcendentals=0,
        bytes_accessed=int(grid_n * Ep * (Hp * itemsize_x + 4)
                           + Hp * Hp * itemsize_w + Hp * 4
                           + n_part * Np * Hp * itemsize_o),
    )

    def build(single_buffer_weights):
        res_kw = dict(pipeline_mode=pl.Buffered(1)) if single_buffer_weights else {}
        in_specs = [
            pl.BlockSpec((1, tE), lambda c, n, e: (0, c * grid_e + e)),   # index
            pl.BlockSpec((tE, Hp), lambda c, n, e: (c * grid_e + e, 0)),  # x
            pl.BlockSpec((Hp, Hp), lambda c, n, e: (0, 0), **res_kw),     # W
            pl.BlockSpec((1, Hp), lambda c, n, e: (0, 0), **res_kw),      # bias
        ]
        return pl.pallas_call(
            adamm_agg_kernel,
            out_shape=out_shape,
            grid_spec=pltpu.PrefetchScalarGridSpec(
                num_scalar_prefetch=0,
                grid=grid,
                in_specs=in_specs,
                out_specs=pl.BlockSpec((None, tN, Hp), lambda c, n, e: (c, n, 0)),
                scratch_shapes=[pltpu.VMEM((tN, Hp), jnp.float32)],
            ),
            compiler_params=pltpu.CompilerParams(
                dimension_semantics=("parallel", "parallel", "arbitrary"),
                vmem_limit_bytes=int(cap),
            ),
            cost_estimate=cost,
        )

    try:
        # W / bias never change across the grid -> single-buffer them to halve
        # their VMEM footprint.
        out_p = build(True)(idx_in, x_in, w_t, b_row)
    except Exception:
        # Fallback if this jax version rejects BlockSpec pipeline_mode / Buffered(1).
        out_p = build(False)(idx_in, x_in, w_t, b_row)

    out = out_p[0] if n_part == 1 else out_p[0] + out_p[1]
    return out[:N, :H]


if __name__ == "__main__":
    key = jax.random.PRNGKey(0)
    k_x, k_idx, k_w, k_b = jax.random.split(key, 4)

    # ---- Test 1: small unaligned shapes (exercises the padded path). ----
    E, H, N = 8, 32, 4
    x = jax.random.normal(k_x, (E, H), dtype=jnp.float32)
    index = jax.random.randint(k_idx, (E,), 0, N, dtype=jnp.int32)

    limit_w = (6.0 / (H + H)) ** 0.5
    w = jax.random.uniform(k_w, (H, H), dtype=jnp.float32,
                           minval=-limit_w, maxval=limit_w)
    limit_b = 1.0 / (H ** 0.5)
    b = jax.random.uniform(k_b, (H,), dtype=jnp.float32,
                           minval=-limit_b, maxval=limit_b)

    out = jax.block_until_ready(adamm_agg(x, index, w, b, N))
    out_ref = jax.ops.segment_sum(x, index, num_segments=N) @ w.T + b
    assert jnp.allclose(out, out_ref, atol=1e-5, rtol=1e-5), "mismatch (test 1)"

    # ---- Test 2: aligned shapes (exercises the pad-free x path and the
    # two-way E split with wrapper-side partial sum). ----
    E2, H2, N2 = 1024, 128, 10
    k_x2, k_idx2, k_w2, k_b2 = jax.random.split(jax.random.PRNGKey(1), 4)
    x2 = jax.random.normal(k_x2, (E2, H2), dtype=jnp.float32)
    idx2 = jax.random.randint(k_idx2, (E2,), 0, N2, dtype=jnp.int32)
    w2 = jax.random.uniform(k_w2, (H2, H2), dtype=jnp.float32,
                            minval=-(6.0 / (2 * H2)) ** 0.5,
                            maxval=(6.0 / (2 * H2)) ** 0.5)
    b2 = jax.random.uniform(k_b2, (H2,), dtype=jnp.float32,
                            minval=-1.0 / H2 ** 0.5, maxval=1.0 / H2 ** 0.5)

    out2 = jax.block_until_ready(adamm_agg(x2, idx2, w2, b2, N2))
    out2_ref = jax.ops.segment_sum(x2, idx2, num_segments=N2) @ w2.T + b2
    assert jnp.allclose(out2, out2_ref, atol=5e-4, rtol=1e-5), "mismatch (test 2)"

    print("KERNEL_OK")
</pallas_src>

<mosaic_0001>
module attributes {stable_mosaic.version = 11 : i64} {
  func.func @adamm_agg_kernel(%arg0: i32, %arg1: i32, %arg2: i32, %arg3: memref<1x128xi32, #tpu.memory_space<vmem>>, %arg4: memref<128x128xf32, #tpu.memory_space<vmem>>, %arg5: memref<128x128xf32, #tpu.memory_space<vmem>>, %arg6: memref<1x128xf32, #tpu.memory_space<vmem>>, %arg7: memref<1x8x128xf32, #tpu.memory_space<vmem>>, %arg8: memref<8x128xf32, #tpu.memory_space<vmem>>) attributes {dimension_semantics = [#tpu.dimension_semantics<parallel>, #tpu.dimension_semantics<parallel>, #tpu.dimension_semantics<arbitrary>], iteration_bounds = array<i64: 1, 1, 1>, scalar_prefetch = 0 : i64, scratch_operands = 1 : i64, tpu.core_type = #tpu.core_type<tc>, window_params = [{transform_indices = @transform_0, window_bounds = array<i64: 1, 128>}, {transform_indices = @transform_1, window_bounds = array<i64: 128, 128>}, {pipeline_mode = #tpu.pipeline_mode<synchronous>, transform_indices = @transform_2, window_bounds = array<i64: 128, 128>}, {pipeline_mode = #tpu.pipeline_mode<synchronous>, transform_indices = @transform_3, window_bounds = array<i64: 1, 128>}, {transform_indices = @transform_4, window_bounds = array<i64: 1, 8, 128>}]} {
    %c0_i32 = arith.constant 0 : i32
    %0 = arith.cmpi eq, %arg2, %c0_i32 : i32
    %1 = arith.extui %0 : i1 to i32
    %c0_i32_0 = arith.constant 0 : i32
    %2 = arith.cmpi ne, %1, %c0_i32_0 : i32
    scf.if %2 {
      %cst_10 = arith.constant 0.000000e+00 : f32
      %20 = vector.broadcast %cst_10 : f32 to vector<8x128xf32>
      %c0_11 = arith.constant 0 : index
      %c0_12 = arith.constant 0 : index
      %21 = vector.load %arg8[%c0_11, %c0_12] : memref<8x128xf32, #tpu.memory_space<vmem>>, vector<8x128xf32>
      tpu.vector_store %arg8[%c0_11, %c0_12], %20 {strides = array<i32>} : memref<8x128xf32, #tpu.memory_space<vmem>>, vector<8x128xf32>,
    } else {
    }
    %c0 = arith.constant 0 : index
    %c0_1 = arith.constant 0 : index
    %3 = vector.load %arg3[%c0, %c0_1] : memref<1x128xi32, #tpu.memory_space<vmem>>, vector<1x128xi32>
    %c8_i32 = arith.constant 8 : i32
    %4 = arith.muli %arg1, %c8_i32 : i32
    %5 = vector.broadcast %4 : i32 to vector<1x128xi32>
    %6 = arith.subi %3, %5 : vector<1x128xi32>
    %7 = tpu.iota {dimensions = array<i32: 0>} : vector<8x128xi32>
    %8 = vector.broadcast %6 : vector<1x128xi32> to vector<8x128xi32>
    %9 = arith.cmpi eq, %7, %8 : vector<8x128xi32>
    %10 = arith.extui %9 : vector<8x128xi1> to vector<8x128xi32>
    %11 = arith.sitofp %10 : vector<8x128xi32> to vector<8x128xf32>
    %c0_2 = arith.constant 0 : index
    %c0_3 = arith.constant 0 : index
    %12 = vector.load %arg8[%c0_2, %c0_3] : memref<8x128xf32, #tpu.memory_space<vmem>>, vector<8x128xf32>
    %c0_4 = arith.constant 0 : index
    %c0_5 = arith.constant 0 : index
    %13 = vector.load %arg4[%c0_4, %c0_5] : memref<128x128xf32, #tpu.memory_space<vmem>>, vector<128x128xf32>
    %cst = arith.constant dense<0.000000e+00> : vector<8x128xf32>
    %14 = tpu.matmul %11, %13, %cst {dimension_numbers = #tpu.dot_dimension_numbers<[1], [0], [0], [1], [0, 0, 1, 1], [], []>} : vector<8x128xf32>, vector<128x128xf32>, vector<8x128xf32> -> vector<8x128xf32>
    %15 = arith.addf %12, %14 : vector<8x128xf32>
    %c0_6 = arith.constant 0 : index
    %c0_7 = arith.constant 0 : index
    %16 = vector.load %arg8[%c0_6, %c0_7] : memref<8x128xf32, #tpu.memory_space<vmem>>, vector<8x128xf32>
    tpu.vector_store %arg8[%c0_6, %c0_7], %15 {strides = array<i32>} : memref<8x128xf32, #tpu.memory_space<vmem>>, vector<8x128xf32>,
    %c0_i32_8 = arith.constant 0 : i32
    %17 = arith.cmpi eq, %arg2, %c0_i32_8 : i32
    %18 = arith.extui %17 : i1 to i32
    %c0_i32_9 = arith.constant 0 : i32
    %19 = arith.cmpi ne, %18, %c0_i32_9 : i32
    scf.if %19 {
      %c0_10 = arith.constant 0 : index
      %c0_11 = arith.constant 0 : index
      %20 = vector.load %arg8[%c0_10, %c0_11] : memref<8x128xf32, #tpu.memory_space<vmem>>, vector<8x128xf32>
      %c0_12 = arith.constant 0 : index
      %c0_13 = arith.constant 0 : index
      %21 = vector.load %arg5[%c0_12, %c0_13] : memref<128x128xf32, #tpu.memory_space<vmem>>, vector<128x128xf32>
      %cst_14 = arith.constant dense<0.000000e+00> : vector<8x128xf32>
      %22 = tpu.matmul %20, %21, %cst_14 {dimension_numbers = #tpu.dot_dimension_numbers<[1], [0], [0], [1], [0, 0, 1, 1], [], []>} : vector<8x128xf32>, vector<128x128xf32>, vector<8x128xf32> -> vector<8x128xf32>
      %c0_i32_15 = arith.constant 0 : i32
      %23 = arith.cmpi eq, %arg0, %c0_i32_15 : i32
      %c0_16 = arith.constant 0 : index
      %c0_17 = arith.constant 0 : index
      %24 = vector.load %arg6[%c0_16, %c0_17] : memref<1x128xf32, #tpu.memory_space<vmem>>, vector<1x128xf32>
      %cst_18 = arith.constant 0.000000e+00 : f32
      %25 = vector.broadcast %cst_18 : f32 to vector<1x128xf32>
      %26 = arith.select %23, %24, %25 : vector<1x128xf32>
      %27 = vector.broadcast %26 : vector<1x128xf32> to vector<8x128xf32>
      %28 = arith.addf %22, %27 : vector<8x128xf32>
      %c0_19 = arith.constant 0 : index
      %c0_20 = arith.constant 0 : index
      %c0_21 = arith.constant 0 : index
      %29 = vector.load %arg7[%c0_19, %c0_20, %c0_21] : memref<1x8x128xf32, #tpu.memory_space<vmem>>, vector<1x8x128xf32>
      %30 = vector.shape_cast %29 : vector<1x8x128xf32> to vector<8x128xf32>
      %31 = vector.shape_cast %28 : vector<8x128xf32> to vector<1x8x128xf32>
      tpu.vector_store %arg7[%c0_19, %c0_20, %c0_21], %31 {strides = array<i32>} : memref<1x8x128xf32, #tpu.memory_space<vmem>>, vector<1x8x128xf32>,
    } else {
    }
    return
  }
  func.func @transform_0(%arg0: i32, %arg1: i32, %arg2: i32) -> (i32, i32) {
    %c1_i32 = arith.constant 1 : i32
    %0 = arith.muli %arg0, %c1_i32 : i32
    %1 = arith.addi %0, %arg2 : i32
    %c0_i32 = arith.constant 0 : i32
    %c0_i32_0 = arith.constant 0 : i32
    return %c0_i32, %1 : i32, i32
  }
  func.func @transform_1(%arg0: i32, %arg1: i32, %arg2: i32) -> (i32, i32) {
    %c1_i32 = arith.constant 1 : i32
    %0 = arith.muli %arg0, %c1_i32 : i32
    %1 = arith.addi %0, %arg2 : i32
    %c0_i32 = arith.constant 0 : i32
    %c0_i32_0 = arith.constant 0 : i32
    return %1, %c0_i32 : i32, i32
  }
  func.func @transform_2(%arg0: i32, %arg1: i32, %arg2: i32) -> (i32, i32) {
    %c0_i32 = arith.constant 0 : i32
    %c0_i32_0 = arith.constant 0 : i32
    %c0_i32_1 = arith.constant 0 : i32
    return %c0_i32, %c0_i32_0 : i32, i32
  }
  func.func @transform_3(%arg0: i32, %arg1: i32, %arg2: i32) -> (i32, i32) {
    %c0_i32 = arith.constant 0 : i32
    %c0_i32_0 = arith.constant 0 : i32
    %c0_i32_1 = arith.constant 0 : i32
    return %c0_i32, %c0_i32_0 : i32, i32
  }
  func.func @transform_4(%arg0: i32, %arg1: i32, %arg2: i32) -> (i32, i32, i32) {
    %c0_i32 = arith.constant 0 : i32
    %c0_i32_0 = arith.constant 0 : i32
    return %arg0, %arg1, %c0_i32 : i32, i32, i32
  }
}

module attributes {stable_mosaic.version = 11 : i64} {
  func.func @adamm_agg_kernel(%arg0: i32, %arg1: i32, %arg2: i32, %arg3: memref<1x128xi32, #tpu.memory_space<vmem>>, %arg4: memref<128x128xf32, #tpu.memory_space<vmem>>, %arg5: memref<128x128xf32, #tpu.memory_space<vmem>>, %arg6: memref<1x128xf32, #tpu.memory_space<vmem>>, %arg7: memref<1x8x128xf32, #tpu.memory_space<vmem>>, %arg8: memref<8x128xf32, #tpu.memory_space<vmem>>) attributes {dimension_semantics = [#tpu.dimension_semantics<parallel>, #tpu.dimension_semantics<parallel>, #tpu.dimension_semantics<arbitrary>], iteration_bounds = array<i64: 1, 1, 1>, scalar_prefetch = 0 : i64, scratch_operands = 1 : i64, tpu.core_type = #tpu.core_type<tc>, window_params = [{transform_indices = @transform_0, window_bounds = array<i64: 1, 128>}, {transform_indices = @transform_1, window_bounds = array<i64: 128, 128>}, {pipeline_mode = #tpu.pipeline_mode<synchronous>, transform_indices = @transform_2, window_bounds = array<i64: 128, 128>}, {pipeline_mode = #tpu.pipeline_mode<synchronous>, transform_indices = @transform_3, window_bounds = array<i64: 1, 128>}, {transform_indices = @transform_4, window_bounds = array<i64: 1, 8, 128>}]} {
    %c0_i32 = arith.constant 0 : i32
    %0 = arith.cmpi eq, %arg2, %c0_i32 : i32
    %1 = arith.extui %0 : i1 to i32
    %c0_i32_0 = arith.constant 0 : i32
    %2 = arith.cmpi ne, %1, %c0_i32_0 : i32
    scf.if %2 {
      %cst_10 = arith.constant 0.000000e+00 : f32
      %20 = vector.broadcast %cst_10 : f32 to vector<8x128xf32>
      %c0_11 = arith.constant 0 : index
      %c0_12 = arith.constant 0 : index
      %21 = vector.load %arg8[%c0_11, %c0_12] : memref<8x128xf32, #tpu.memory_space<vmem>>, vector<8x128xf32>
      tpu.vector_store %arg8[%c0_11, %c0_12], %20 {strides = array<i32>} : memref<8x128xf32, #tpu.memory_space<vmem>>, vector<8x128xf32>,
    } else {
    }
    %c0 = arith.constant 0 : index
    %c0_1 = arith.constant 0 : index
    %3 = vector.load %arg3[%c0, %c0_1] : memref<1x128xi32, #tpu.memory_space<vmem>>, vector<1x128xi32>
    %c8_i32 = arith.constant 8 : i32
    %4 = arith.muli %arg1, %c8_i32 : i32
    %5 = vector.broadcast %4 : i32 to vector<1x128xi32>
    %6 = arith.subi %3, %5 : vector<1x128xi32>
    %7 = tpu.iota {dimensions = array<i32: 0>} : vector<8x128xi32>
    %8 = vector.broadcast %6 : vector<1x128xi32> to vector<8x128xi32>
    %9 = arith.cmpi eq, %7, %8 : vector<8x128xi32>
    %10 = arith.extui %9 : vector<8x128xi1> to vector<8x128xi32>
    %11 = arith.sitofp %10 : vector<8x128xi32> to vector<8x128xf32>
    %c0_2 = arith.constant 0 : index
    %c0_3 = arith.constant 0 : index
    %12 = vector.load %arg8[%c0_2, %c0_3] : memref<8x128xf32, #tpu.memory_space<vmem>>, vector<8x128xf32>
    %c0_4 = arith.constant 0 : index
    %c0_5 = arith.constant 0 : index
    %13 = vector.load %arg4[%c0_4, %c0_5] : memref<128x128xf32, #tpu.memory_space<vmem>>, vector<128x128xf32>
    %cst = arith.constant dense<0.000000e+00> : vector<8x128xf32>
    %14 = tpu.matmul %11, %13, %cst {dimension_numbers = #tpu.dot_dimension_numbers<[1], [0], [0], [1], [0, 0, 1, 1], [], []>} : vector<8x128xf32>, vector<128x128xf32>, vector<8x128xf32> -> vector<8x128xf32>
    %15 = arith.addf %12, %14 : vector<8x128xf32>
    %c0_6 = arith.constant 0 : index
    %c0_7 = arith.constant 0 : index
    %16 = vector.load %arg8[%c0_6, %c0_7] : memref<8x128xf32, #tpu.memory_space<vmem>>, vector<8x128xf32>
    tpu.vector_store %arg8[%c0_6, %c0_7], %15 {strides = array<i32>} : memref<8x128xf32, #tpu.memory_space<vmem>>, vector<8x128xf32>,
    %c0_i32_8 = arith.constant 0 : i32
    %17 = arith.cmpi eq, %arg2, %c0_i32_8 : i32
    %18 = arith.extui %17 : i1 to i32
    %c0_i32_9 = arith.constant 0 : i32
    %19 = arith.cmpi ne, %18, %c0_i32_9 : i32
    scf.if %19 {
      %c0_10 = arith.constant 0 : index
      %c0_11 = arith.constant 0 : index
      %20 = vector.load %arg8[%c0_10, %c0_11] : memref<8x128xf32, #tpu.memory_space<vmem>>, vector<8x128xf32>
      %c0_12 = arith.constant 0 : index
      %c0_13 = arith.constant 0 : index
      %21 = vector.load %arg5[%c0_12, %c0_13] : memref<128x128xf32, #tpu.memory_space<vmem>>, vector<128x128xf32>
      %cst_14 = arith.constant dense<0.000000e+00> : vector<8x128xf32>
      %22 = tpu.matmul %20, %21, %cst_14 {dimension_numbers = #tpu.dot_dimension_numbers<[1], [0], [0], [1], [0, 0, 1, 1], [], []>} : vector<8x128xf32>, vector<128x128xf32>, vector<8x128xf32> -> vector<8x128xf32>
      %c0_i32_15 = arith.constant 0 : i32
      %23 = arith.cmpi eq, %arg0, %c0_i32_15 : i32
      %c0_16 = arith.constant 0 : index
      %c0_17 = arith.constant 0 : index
      %24 = vector.load %arg6[%c0_16, %c0_17] : memref<1x128xf32, #tpu.memory_space<vmem>>, vector<1x128xf32>
      %cst_18 = arith.constant 0.000000e+00 : f32
      %25 = vector.broadcast %cst_18 : f32 to vector<1x128xf32>
      %26 = arith.select %23, %24, %25 : vector<1x128xf32>
      %27 = vector.broadcast %26 : vector<1x128xf32> to vector<8x128xf32>
      %28 = arith.addf %22, %27 : vector<8x128xf32>
      %c0_19 = arith.constant 0 : index
      %c0_20 = arith.constant 0 : index
      %c0_21 = arith.constant 0 : index
      %29 = vector.load %arg7[%c0_19, %c0_20, %c0_21] : memref<1x8x128xf32, #tpu.memory_space<vmem>>, vector<1x8x128xf32>
      %30 = vector.shape_cast %29 : vector<1x8x128xf32> to vector<8x128xf32>
      %31 = vector.shape_cast %28 : vector<8x128xf32> to vector<1x8x128xf32>
      tpu.vector_store %arg7[%c0_19, %c0_20, %c0_21], %31 {strides = array<i32>} : memref<1x8x128xf32, #tpu.memory_space<vmem>>, vector<1x8x128xf32>,
    } else {
    }
    return
  }
  func.func @transform_0(%arg0: i32, %arg1: i32, %arg2: i32) -> (i32, i32) {
    %c1_i32 = arith.constant 1 : i32
    %0 = arith.muli %arg0, %c1_i32 : i32
    %1 = arith.addi %0, %arg2 : i32
    %c0_i32 = arith.constant 0 : i32
    %c0_i32_0 = arith.constant 0 : i32
    return %c0_i32, %1 : i32, i32
  }
  func.func @transform_1(%arg0: i32, %arg1: i32, %arg2: i32) -> (i32, i32) {
    %c1_i32 = arith.constant 1 : i32
    %0 = arith.muli %arg0, %c1_i32 : i32
    %1 = arith.addi %0, %arg2 : i32
    %c0_i32 = arith.constant 0 : i32
    %c0_i32_0 = arith.constant 0 : i32
    return %1, %c0_i32 : i32, i32
  }
  func.func @transform_2(%arg0: i32, %arg1: i32, %arg2: i32) -> (i32, i32) {
    %c0_i32 = arith.constant 0 : i32
    %c0_i32_0 = arith.constant 0 : i32
    %c0_i32_1 = arith.constant 0 : i32
    return %c0_i32, %c0_i32_0 : i32, i32
  }
  func.func @transform_3(%arg0: i32, %arg1: i32, %arg2: i32) -> (i32, i32) {
    %c0_i32 = arith.constant 0 : i32
    %c0_i32_0 = arith.constant 0 : i32
    %c0_i32_1 = arith.constant 0 : i32
    return %c0_i32, %c0_i32_0 : i32, i32
  }
  func.func @transform_4(%arg0: i32, %arg1: i32, %arg2: i32) -> (i32, i32, i32) {
    %c0_i32 = arith.constant 0 : i32
    %c0_i32_0 = arith.constant 0 : i32
    return %arg0, %arg1, %c0_i32 : i32, i32, i32
  }
}

</mosaic_0001>

<llo_original>
// kernel: tpu_custom_call.1
$region0: #{tpu_custom_call.1}
  #allocation0 [shape = 'u32[]', space=smem, size = 0x4, offset = 0x4, fixed_abs, tag = 'smem constant byte address 0x4 - core index']
  #allocation1 [shape = 'u32[144,128]{1,0:T(1,128)}', space=vmem, size = 0x12000, scoped, tag = 'internal scratch']
  #allocation2 [shape = 'f32[8,128]{1,0:T(8,128)}', space=vmem, size = 0x1000, scoped, tag = 'scratch operand']
  %s0 = inlined_call_operand.hbm [shape: s32[1,128], index: 0, kind: input, shape index: {}]
  %s1 = inlined_call_operand.hbm [shape: f32[128,128], index: 1, kind: input, shape index: {}]
  %s2 = inlined_call_operand.hbm [shape: f32[128,128], index: 2, kind: input, shape index: {}]
  %s3 = inlined_call_operand.vmem [shape: f32[1,128], index: 3, kind: input, shape index: {}]
  %s4 = inlined_call_operand.hbm [shape: f32[1,8,128], index: 4, kind: output, shape index: {}]
  %s5 = sld [smem:[#allocation0]]
  $region46: #{tpu_custom_call.1} parent=0
    _
  %s7 = ssub.s32 1, %s5
  %s8 = scalar_select 0, %s7, %s5
  $region1: #{tpu_custom_call.1} parent=0
    #allocation3 [shape = 'u8[512]{0}', space=vmem, size = 0x400, scoped, tag = 'input window, operand 0, single buffered']
    #allocation4 [shape = 's32[1]{0}', space=sflag, size = 0x4, scoped, tag = 'scoped memory for tpu_custom_call.1']
    #allocation5 [shape = 's32[1]{0}', space=sflag, size = 0x4, scoped, tag = 'scoped memory for tpu_custom_call.1']
    #allocation6 [shape = 'u8[65536]{0}', space=vmem, size = 0x10000, scoped, tag = 'input window, operand 1, single buffered']
    #allocation7 [shape = 's32[1]{0}', space=sflag, size = 0x4, scoped, tag = 'scoped memory for tpu_custom_call.1']
    #allocation8 [shape = 'u8[65536]{0}', space=vmem, size = 0x10000, scoped, tag = 'input window, operand 2, single buffered']
    #allocation9 [shape = 'u8[4096]{0}', space=vmem, size = 0x1000, scoped, tag = 'output window, operand 0, single buffered']
    %9 = vsyncpa [#allocation4], 0
    %10 = vsyncpa [#allocation7], 0
    %11 = vsyncpa [#allocation5], 0
    // Predicated region
    $region2: #{tpu_custom_call.1} parent=1 // pred_check
      _
    $region3: #{tpu_custom_call.1} parent=1 // pred_check_branch
      %13 = sbr.rel (0) target = $region5
    $region4: #{tpu_custom_call.1} parent=1 // pred_region
      %s14 = sadd.s32 0, 0
      %s16 = ssub.s32 16, 16
      %17 = vsyncadd [#allocation4], %s16
      %s18 = smul.addr %s14, 16
      %s19 = scalar_lea.hbm %s0, %s18
      %s21 = sshll.u32 [#allocation3], 4
      %s22 = int_to_ptr.vmem [resolvable:$true] %s21
      %24 = dma.hbm_to_vmem [thread:$0]  %s19, 16, %s22, [#allocation4]
    $region5: #{tpu_custom_call.1} parent=1 // pred_fallthru
      _
    // Predicated region
    $region6: #{tpu_custom_call.1} parent=1 // pred_check
      _
    $region7: #{tpu_custom_call.1} parent=1 // pred_check_branch
      %26 = sbr.rel (0) target = $region9
    $region8: #{tpu_custom_call.1} parent=1 // pred_region
      %s27 = sadd.s32 0, 0
      %s28 = smul.u32 16, %s27
      %s30 = ssub.s32 2048, 2048
      %31 = vsyncadd [#allocation7], %s30
      %s32 = smul.addr %s28, 128
      %s33 = scalar_lea.hbm %s1, %s32
      %s34 = sshll.u32 [#allocation6], 4
      %s35 = int_to_ptr.vmem [resolvable:$true] %s34
      %40 = dma.hbm_to_vmem [thread:$0]  %s33, 2048, %s35, [#allocation7], 128, 128, 8
    $region9: #{tpu_custom_call.1} parent=1 // pred_fallthru
      _
    // Predicated region
    $region10: #{tpu_custom_call.1} parent=1 // pred_check
      _
    $region11: #{tpu_custom_call.1} parent=1 // pred_check_branch
      %42 = sbr.rel (0) target = $region13
    $region12: #{tpu_custom_call.1} parent=1 // pred_region
      %s44 = ssub.s32 2048, 2048
      %45 = vsyncadd [#allocation7], %s44
      %s46 = sshll.u32 [#allocation8], 4
      %s47 = int_to_ptr.vmem [resolvable:$true] %s46
      %52 = dma.hbm_to_vmem [thread:$0]  %s2, 2048, %s47, [#allocation7], 128, 128, 8
    $region13: #{tpu_custom_call.1} parent=1 // pred_fallthru
      _
    // Predicated region
    $region14: #{tpu_custom_call.1} parent=1 // pred_check
      _
    $region15: #{tpu_custom_call.1} parent=1 // pred_check_branch
      %54 = sbr.rel (0) target = $region17
    $region16: #{tpu_custom_call.1} parent=1 // pred_region
      _
    $region17: #{tpu_custom_call.1} parent=1 // pred_fallthru
      _
    // Predicated region
    $region18: #{tpu_custom_call.1} parent=1 // pred_check
      _
    $region19: #{tpu_custom_call.1} parent=1 // pred_check_branch
      %56 = sbr.rel (0) target = $region21
    $region20: #{tpu_custom_call.1} parent=1 // pred_region
      %57 = dma.done [#allocation4], 16
    $region21: #{tpu_custom_call.1} parent=1 // pred_fallthru
      _
    // Predicated region
    $region22: #{tpu_custom_call.1} parent=1 // pred_check
      _
    $region23: #{tpu_custom_call.1} parent=1 // pred_check_branch
      %59 = sbr.rel (0) target = $region25
    $region24: #{tpu_custom_call.1} parent=1 // pred_region
      %60 = dma.done [#allocation7], 2048
    $region25: #{tpu_custom_call.1} parent=1 // pred_fallthru
      _
    // Predicated region
    $region26: #{tpu_custom_call.1} parent=1 // pred_check
      _
    $region27: #{tpu_custom_call.1} parent=1 // pred_check_branch
      %62 = sbr.rel (0) target = $region29
    $region28: #{tpu_custom_call.1} parent=1 // pred_region
      %63 = dma.done [#allocation7], 2048
    $region29: #{tpu_custom_call.1} parent=1 // pred_fallthru
      _
    %s64 = sadd.s32 0, 0
    %s65 = sadd.s32 0, 0
    %s66 = smul.u32 16, %s65
    %p67 = scmp.eq.s32.totalorder 0, 0
    // Predicated region
    $region30: #{tpu_custom_call.1} parent=1 // pred_check
      %p68 = pneg %p67
    $region31: #{tpu_custom_call.1} parent=1 // pred_check_branch
      %70 = sbr.rel (%p68) target = $region33
    $region32: #{tpu_custom_call.1} parent=1 // pred_region
      %71 = vst [vmem:[#allocation2] sm:$0xff] 0.0
    $region33: #{tpu_custom_call.1} parent=1 // pred_fallthru
      _
    %v72 = vld [vmem:[#allocation3] sm:$0x1]
    %s73 = smul.u32 0, 8
    %v74 = vstv %s73
    %v75 = vsub.s32 %v72, %v74
    %v76 = vlaneseq
    %v77 = vshrl.u32 %v76, 7
    %v78 = vlaneseq
    %v79 = vshrl.u32 %v78, 7
    %v80 = vsub.s32 0, %v79
    %v81 = vrot.slane %v75, %v80
    %vm82 = vcmp.eq.s32.totalorder %v77, %v81
    %v83 = vsel %vm82, 1, 0
    %v84 = vcvt.s32.f32 %v83
    %v85 = vld [vmem:[#allocation2] sm:$0xff]
    %v86 = vld [vmem:[#allocation6] sm:$0xff]
    %v87 = vld [vmem:[#allocation6 + $0x8] sm:$0xff]
    %v88 = vld [vmem:[#allocation6 + $0x10] sm:$0xff]
    %v89 = vld [vmem:[#allocation6 + $0x18] sm:$0xff]
    %v90 = vld [vmem:[#allocation6 + $0x20] sm:$0xff]
    %v91 = vld [vmem:[#allocation6 + $0x28] sm:$0xff]
    %v92 = vld [vmem:[#allocation6 + $0x30] sm:$0xff]
    %v93 = vld [vmem:[#allocation6 + $0x38] sm:$0xff]
    %v94 = vld [vmem:[#allocation6 + $0x40] sm:$0xff]
    %v95 = vld [vmem:[#allocation6 + $0x48] sm:$0xff]
    %v96 = vld [vmem:[#allocation6 + $0x50] sm:$0xff]
    %v97 = vld [vmem:[#allocation6 + $0x58] sm:$0xff]
    %v98 = vld [vmem:[#allocation6 + $0x60] sm:$0xff]
    %v99 = vld [vmem:[#allocation6 + $0x68] sm:$0xff]
    %v100 = vld [vmem:[#allocation6 + $0x70] sm:$0xff]
    %v101 = vld [vmem:[#allocation6 + $0x78] sm:$0xff]
    %102 = vmatprep.subr.mxu0 0.0
    %103 = vmatpush1.msra.mxu0 %v101
    %104 = vmatprep.subr.mxu0 0.0
    %105 = vmatpush1.msra.mxu0 %v100
    %106 = vmatprep.subr.mxu0 0.0
    %107 = vmatpush1.msra.mxu0 %v99
    %108 = vmatprep.subr.mxu0 0.0
    %109 = vmatpush1.msra.mxu0 %v98
    %110 = vmatprep.subr.mxu0 0.0
    %111 = vmatpush1.msra.mxu0 %v97
    %112 = vmatprep.subr.mxu0 0.0
    %113 = vmatpush1.msra.mxu0 %v96
    %114 = vmatprep.subr.mxu0 0.0
    %115 = vmatpush1.msra.mxu0 %v95
    %116 = vmatprep.subr.mxu0 0.0
    %117 = vmatpush1.msra.mxu0 %v94
    %118 = vmatprep.subr.mxu0 0.0
    %119 = vmatpush1.msra.mxu0 %v93
    %120 = vmatprep.subr.mxu0 0.0
    %121 = vmatpush1.msra.mxu0 %v92
    %122 = vmatprep.subr.mxu0 0.0
    %123 = vmatpush1.msra.mxu0 %v91
    %124 = vmatprep.subr.mxu0 0.0
    %125 = vmatpush1.msra.mxu0 %v90
    %126 = vmatprep.subr.mxu0 0.0
    %127 = vmatpush1.msra.mxu0 %v89
    %128 = vmatprep.subr.mxu0 0.0
    %129 = vmatpush1.msra.mxu0 %v88
    %130 = vmatprep.subr.mxu0 0.0
    %131 = vmatpush1.msra.mxu0 %v87
    %132 = vmatprep.subr.mxu0 0.0
    %133 = vmatpush1.msra.mxu0 %v86
    %134 = vmatprep.subr.mxu0 0.0
    %135 = vmatpush2.msra.mxu0 0.0
    %136 = vmatprep.subr.mxu0 0.0
    %137 = vmatpush2.msra.mxu0 0.0
    %138 = vmatprep.subr.mxu0 0.0
    %139 = vmatpush2.msra.mxu0 0.0
    %140 = vmatprep.subr.mxu0 0.0
    %141 = vmatpush2.msra.mxu0 0.0
    %142 = vmatprep.subr.mxu0 0.0
    %143 = vmatpush2.msra.mxu0 0.0
    %144 = vmatprep.subr.mxu0 0.0
    %145 = vmatpush2.msra.mxu0 0.0
    %146 = vmatprep.subr.mxu0 0.0
    %147 = vmatpush2.msra.mxu0 0.0
    %148 = vmatprep.subr.mxu0 0.0
    %149 = vmatpush2.msra.mxu0 0.0
    %150 = vmatprep.subr.mxu0 0.0
    %151 = vmatpush2.msra.mxu0 0.0
    %152 = vmatprep.subr.mxu0 0.0
    %153 = vmatpush2.msra.mxu0 0.0
    %154 = vmatprep.subr.mxu0 0.0
    %155 = vmatpush2.msra.mxu0 0.0
    %156 = vmatprep.subr.mxu0 0.0
    %157 = vmatpush2.msra.mxu0 0.0
    %158 = vmatprep.subr.mxu0 0.0
    %159 = vmatpush2.msra.mxu0 0.0
    %160 = vmatprep.subr.mxu0 0.0
    %161 = vmatpush2.msra.mxu0 0.0
    %162 = vmatprep.subr.mxu0 0.0
    %163 = vmatpush2.msra.mxu0 0.0
    %164 = vmatprep.subr.mxu0 0.0
    %165 = vmatpush2.msra.mxu0 0.0
    %166 = vmatprep.mubr.f32.mxu0 0.0
    %167 = vmatmul.mubr.f32.gmra.mxu0 %v84
    %v168 = vpop.f32.mrf.mxu0
    %v169 = vadd.f32 0.0, %v168
    %v170 = vpop.f32.mrf.mxu0
    %171 = vdwg.mxu0
    %v172 = vadd.f32 %v85, %v169
    %173 = vst [vmem:[#allocation2] sm:$0xff] %v172
    // Predicated region
    $region34: #{tpu_custom_call.1} parent=1 // pred_check
      %p174 = pneg %p67
    $region35: #{tpu_custom_call.1} parent=1 // pred_check_branch
      %176 = sbr.rel (%p174) target = $region37
    $region36: #{tpu_custom_call.1} parent=1 // pred_region
      %v177 = vld [vmem:[#allocation2] sm:$0xff]
      %v178 = vld [vmem:[#allocation8] sm:$0xff]
      %v179 = vld [vmem:[#allocation8 + $0x8] sm:$0xff]
      %v180 = vld [vmem:[#allocation8 + $0x10] sm:$0xff]
      %v181 = vld [vmem:[#allocation8 + $0x18] sm:$0xff]
      %v182 = vld [vmem:[#allocation8 + $0x20] sm:$0xff]
      %v183 = vld [vmem:[#allocation8 + $0x28] sm:$0xff]
      %v184 = vld [vmem:[#allocation8 + $0x30] sm:$0xff]
      %v185 = vld [vmem:[#allocation8 + $0x38] sm:$0xff]
      %v186 = vld [vmem:[#allocation8 + $0x40] sm:$0xff]
      %v187 = vld [vmem:[#allocation8 + $0x48] sm:$0xff]
      %v188 = vld [vmem:[#allocation8 + $0x50] sm:$0xff]
      %v189 = vld [vmem:[#allocation8 + $0x58] sm:$0xff]
      %v190 = vld [vmem:[#allocation8 + $0x60] sm:$0xff]
      %v191 = vld [vmem:[#allocation8 + $0x68] sm:$0xff]
      %v192 = vld [vmem:[#allocation8 + $0x70] sm:$0xff]
      %v193 = vld [vmem:[#allocation8 + $0x78] sm:$0xff]
      %p194 = scmp.eq.s32.totalorder 0, 0
      %v195 = vld [vmem:[%s3] sm:$0x1]
      %s196 = scalar_select %p194, 1, 0
      %v197 = vstv %s196
      %vm198 = vcmp.eq.s32.totalorder %v197, 1
      %v199 = vsel %vm198, %v195, 0.0
      %v201 = vlaneseq
      %v202 = vshrl.u32 %v201, 7
      %v203 = vsub.s32 0, %v202
      %v204 = vrot.slane %v199, %v203
      %206 = vmatprep.subr.mxu0 0.0
      %207 = vmatpush1.msra.mxu0 %v193
      %208 = vmatprep.subr.mxu0 0.0
      %209 = vmatpush1.msra.mxu0 %v192
      %210 = vmatprep.subr.mxu0 0.0
      %211 = vmatpush1.msra.mxu0 %v191
      %212 = vmatprep.subr.mxu0 0.0
      %213 = vmatpush1.msra.mxu0 %v190
      %214 = vmatprep.subr.mxu0 0.0
      %215 = vmatpush1.msra.mxu0 %v189
      %216 = vmatprep.subr.mxu0 0.0
      %217 = vmatpush1.msra.mxu0 %v188
      %218 = vmatprep.subr.mxu0 0.0
      %219 = vmatpush1.msra.mxu0 %v187
      %220 = vmatprep.subr.mxu0 0.0
      %221 = vmatpush1.msra.mxu0 %v186
      %222 = vmatprep.subr.mxu0 0.0
      %223 = vmatpush1.msra.mxu0 %v185
      %224 = vmatprep.subr.mxu0 0.0
      %225 = vmatpush1.msra.mxu0 %v184
      %226 = vmatprep.subr.mxu0 0.0
      %227 = vmatpush1.msra.mxu0 %v183
      %228 = vmatprep.subr.mxu0 0.0
      %229 = vmatpush1.msra.mxu0 %v182
      %230 = vmatprep.subr.mxu0 0.0
      %231 = vmatpush1.msra.mxu0 %v181
      %232 = vmatprep.subr.mxu0 0.0
      %233 = vmatpush1.msra.mxu0 %v180
      %234 = vmatprep.subr.mxu0 0.0
      %235 = vmatpush1.msra.mxu0 %v179
      %236 = vmatprep.subr.mxu0 0.0
      %237 = vmatpush1.msra.mxu0 %v178
      %238 = vmatprep.subr.mxu0 0.0
      %239 = vmatpush2.msra.mxu0 0.0
      %240 = vmatprep.subr.mxu0 0.0
      %241 = vmatpush2.msra.mxu0 0.0
      %242 = vmatprep.subr.mxu0 0.0
      %243 = vmatpush2.msra.mxu0 0.0
      %244 = vmatprep.subr.mxu0 0.0
      %245 = vmatpush2.msra.mxu0 0.0
      %246 = vmatprep.subr.mxu0 0.0
      %247 = vmatpush2.msra.mxu0 0.0
      %248 = vmatprep.subr.mxu0 0.0
      %249 = vmatpush2.msra.mxu0 0.0
      %250 = vmatprep.subr.mxu0 0.0
      %251 = vmatpush2.msra.mxu0 0.0
      %252 = vmatprep.subr.mxu0 0.0
      %253 = vmatpush2.msra.mxu0 0.0
      %254 = vmatprep.subr.mxu0 0.0
      %255 = vmatpush2.msra.mxu0 0.0
      %256 = vmatprep.subr.mxu0 0.0
      %257 = vmatpush2.msra.mxu0 0.0
      %258 = vmatprep.subr.mxu0 0.0
      %259 = vmatpush2.msra.mxu0 0.0
      %260 = vmatprep.subr.mxu0 0.0
      %261 = vmatpush2.msra.mxu0 0.0
      %262 = vmatprep.subr.mxu0 0.0
      %263 = vmatpush2.msra.mxu0 0.0
      %264 = vmatprep.subr.mxu0 0.0
      %265 = vmatpush2.msra.mxu0 0.0
      %266 = vmatprep.subr.mxu0 0.0
      %267 = vmatpush2.msra.mxu0 0.0
      %268 = vmatprep.subr.mxu0 0.0
      %269 = vmatpush2.msra.mxu0 0.0
      %270 = vmatprep.mubr.f32.mxu0 0.0
      %271 = vmatmul.mubr.f32.gmra.mxu0 %v177
      %v272 = vpop.f32.mrf.mxu0
      %v273 = vadd.f32 %v204, %v272
      %v274 = vpop.f32.mrf.mxu0
      %275 = vdwg.mxu0
      %276 = vst [vmem:[#allocation9] sm:$0xff] %v273
    $region37: #{tpu_custom_call.1} parent=1 // pred_fallthru
      _
    // Predicated region
    $region38: #{tpu_custom_call.1} parent=1 // pred_check
      _
    $region39: #{tpu_custom_call.1} parent=1 // pred_check_branch
      %278 = sbr.rel (0) target = $region41
    $region40: #{tpu_custom_call.1} parent=1 // pred_region
      %s280 = ssub.s32 128, 128
      %281 = vsyncadd [#allocation5], %s280
      %s283 = sshll.u32 [#allocation9], 4
      %s284 = int_to_ptr.vmem [resolvable:$true] %s283
      %286 = dma.vmem_to_hbm [thread:$0]  %s284, 128, %s4, [#allocation5]
    $region41: #{tpu_custom_call.1} parent=1 // pred_fallthru
      _
    // Predicated region
    $region42: #{tpu_custom_call.1} parent=1 // pred_check
      _
    $region43: #{tpu_custom_call.1} parent=1 // pred_check_branch
      %288 = sbr.rel (0) target = $region45
    $region44: #{tpu_custom_call.1} parent=1 // pred_region
      %289 = dma.done [#allocation5], 128
    $region45: #{tpu_custom_call.1} parent=1 // pred_fallthru
      _
    %290 = vsyncpa [#allocation4], 1
    %291 = vsyncpa [#allocation7], 1
    %292 = vsyncpa [#allocation5], 1

// kernel: tpu_custom_call.1
$region0: #{tpu_custom_call.1}
  #allocation0 [shape = 'u32[]', space=smem, size = 0x4, offset = 0x4, fixed_abs, tag = 'smem constant byte address 0x4 - core index']
  #allocation1 [shape = 'u32[144,128]{1,0:T(1,128)}', space=vmem, size = 0x12000, scoped, tag = 'internal scratch']
  #allocation2 [shape = 'f32[8,128]{1,0:T(8,128)}', space=vmem, size = 0x1000, scoped, tag = 'scratch operand']
  %s0 = inlined_call_operand.hbm [shape: s32[1,128], index: 0, kind: input, shape index: {}]
  %s1 = inlined_call_operand.hbm [shape: f32[128,128], index: 1, kind: input, shape index: {}]
  %s2 = inlined_call_operand.hbm [shape: f32[128,128], index: 2, kind: input, shape index: {}]
  %s3 = inlined_call_operand.vmem [shape: f32[1,128], index: 3, kind: input, shape index: {}]
  %s4 = inlined_call_operand.hbm [shape: f32[1,8,128], index: 4, kind: output, shape index: {}]
  %s5 = sld [smem:[#allocation0]]
  $region46: #{tpu_custom_call.1} parent=0
    _
  %s7 = ssub.s32 1, %s5
  %s8 = scalar_select 0, %s7, %s5
  $region1: #{tpu_custom_call.1} parent=0
    #allocation3 [shape = 'u8[512]{0}', space=vmem, size = 0x400, scoped, tag = 'input window, operand 0, single buffered']
    #allocation4 [shape = 's32[1]{0}', space=sflag, size = 0x4, scoped, tag = 'scoped memory for tpu_custom_call.1']
    #allocation5 [shape = 's32[1]{0}', space=sflag, size = 0x4, scoped, tag = 'scoped memory for tpu_custom_call.1']
    #allocation6 [shape = 'u8[65536]{0}', space=vmem, size = 0x10000, scoped, tag = 'input window, operand 1, single buffered']
    #allocation7 [shape = 's32[1]{0}', space=sflag, size = 0x4, scoped, tag = 'scoped memory for tpu_custom_call.1']
    #allocation8 [shape = 'u8[65536]{0}', space=vmem, size = 0x10000, scoped, tag = 'input window, operand 2, single buffered']
    #allocation9 [shape = 'u8[4096]{0}', space=vmem, size = 0x1000, scoped, tag = 'output window, operand 0, single buffered']
    %9 = vsyncpa [#allocation4], 0
    %10 = vsyncpa [#allocation7], 0
    %11 = vsyncpa [#allocation5], 0
    // Predicated region
    $region2: #{tpu_custom_call.1} parent=1 // pred_check
      _
    $region3: #{tpu_custom_call.1} parent=1 // pred_check_branch
      %13 = sbr.rel (0) target = $region5
    $region4: #{tpu_custom_call.1} parent=1 // pred_region
      %s14 = sadd.s32 0, 0
      %s16 = ssub.s32 16, 16
      %17 = vsyncadd [#allocation4], %s16
      %s18 = smul.addr %s14, 16
      %s19 = scalar_lea.hbm %s0, %s18
      %s21 = sshll.u32 [#allocation3], 4
      %s22 = int_to_ptr.vmem [resolvable:$true] %s21
      %24 = dma.hbm_to_vmem [thread:$0]  %s19, 16, %s22, [#allocation4]
    $region5: #{tpu_custom_call.1} parent=1 // pred_fallthru
      _
    // Predicated region
    $region6: #{tpu_custom_call.1} parent=1 // pred_check
      _
    $region7: #{tpu_custom_call.1} parent=1 // pred_check_branch
      %26 = sbr.rel (0) target = $region9
    $region8: #{tpu_custom_call.1} parent=1 // pred_region
      %s27 = sadd.s32 0, 0
      %s28 = smul.u32 16, %s27
      %s30 = ssub.s32 2048, 2048
      %31 = vsyncadd [#allocation7], %s30
      %s32 = smul.addr %s28, 128
      %s33 = scalar_lea.hbm %s1, %s32
      %s34 = sshll.u32 [#allocation6], 4
      %s35 = int_to_ptr.vmem [resolvable:$true] %s34
      %40 = dma.hbm_to_vmem [thread:$0]  %s33, 2048, %s35, [#allocation7], 128, 128, 8
    $region9: #{tpu_custom_call.1} parent=1 // pred_fallthru
      _
    // Predicated region
    $region10: #{tpu_custom_call.1} parent=1 // pred_check
      _
    $region11: #{tpu_custom_call.1} parent=1 // pred_check_branch
      %42 = sbr.rel (0) target = $region13
    $region12: #{tpu_custom_call.1} parent=1 // pred_region
      %s44 = ssub.s32 2048, 2048
      %45 = vsyncadd [#allocation7], %s44
      %s46 = sshll.u32 [#allocation8], 4
      %s47 = int_to_ptr.vmem [resolvable:$true] %s46
      %52 = dma.hbm_to_vmem [thread:$0]  %s2, 2048, %s47, [#allocation7], 128, 128, 8
    $region13: #{tpu_custom_call.1} parent=1 // pred_fallthru
      _
    // Predicated region
    $region14: #{tpu_custom_call.1} parent=1 // pred_check
      _
    $region15: #{tpu_custom_call.1} parent=1 // pred_check_branch
      %54 = sbr.rel (0) target = $region17
    $region16: #{tpu_custom_call.1} parent=1 // pred_region
      _
    $region17: #{tpu_custom_call.1} parent=1 // pred_fallthru
      _
    // Predicated region
    $region18: #{tpu_custom_call.1} parent=1 // pred_check
      _
    $region19: #{tpu_custom_call.1} parent=1 // pred_check_branch
      %56 = sbr.rel (0) target = $region21
    $region20: #{tpu_custom_call.1} parent=1 // pred_region
      %57 = dma.done [#allocation4], 16
    $region21: #{tpu_custom_call.1} parent=1 // pred_fallthru
      _
    // Predicated region
    $region22: #{tpu_custom_call.1} parent=1 // pred_check
      _
    $region23: #{tpu_custom_call.1} parent=1 // pred_check_branch
      %59 = sbr.rel (0) target = $region25
    $region24: #{tpu_custom_call.1} parent=1 // pred_region
      %60 = dma.done [#allocation7], 2048
    $region25: #{tpu_custom_call.1} parent=1 // pred_fallthru
      _
    // Predicated region
    $region26: #{tpu_custom_call.1} parent=1 // pred_check
      _
    $region27: #{tpu_custom_call.1} parent=1 // pred_check_branch
      %62 = sbr.rel (0) target = $region29
    $region28: #{tpu_custom_call.1} parent=1 // pred_region
      %63 = dma.done [#allocation7], 2048
    $region29: #{tpu_custom_call.1} parent=1 // pred_fallthru
      _
    %s64 = sadd.s32 0, 0
    %s65 = sadd.s32 0, 0
    %s66 = smul.u32 16, %s65
    %p67 = scmp.eq.s32.totalorder 0, 0
    // Predicated region
    $region30: #{tpu_custom_call.1} parent=1 // pred_check
      %p68 = pneg %p67
    $region31: #{tpu_custom_call.1} parent=1 // pred_check_branch
      %70 = sbr.rel (%p68) target = $region33
    $region32: #{tpu_custom_call.1} parent=1 // pred_region
      %71 = vst [vmem:[#allocation2] sm:$0xff] 0.0
    $region33: #{tpu_custom_call.1} parent=1 // pred_fallthru
      _
    %v72 = vld [vmem:[#allocation3] sm:$0x1]
    %s73 = smul.u32 0, 8
    %v74 = vstv %s73
    %v75 = vsub.s32 %v72, %v74
    %v76 = vlaneseq
    %v77 = vshrl.u32 %v76, 7
    %v78 = vlaneseq
    %v79 = vshrl.u32 %v78, 7
    %v80 = vsub.s32 0, %v79
    %v81 = vrot.slane %v75, %v80
    %vm82 = vcmp.eq.s32.totalorder %v77, %v81
    %v83 = vsel %vm82, 1, 0
    %v84 = vcvt.s32.f32 %v83
    %v85 = vld [vmem:[#allocation2] sm:$0xff]
    %v86 = vld [vmem:[#allocation6] sm:$0xff]
    %v87 = vld [vmem:[#allocation6 + $0x8] sm:$0xff]
    %v88 = vld [vmem:[#allocation6 + $0x10] sm:$0xff]
    %v89 = vld [vmem:[#allocation6 + $0x18] sm:$0xff]
    %v90 = vld [vmem:[#allocation6 + $0x20] sm:$0xff]
    %v91 = vld [vmem:[#allocation6 + $0x28] sm:$0xff]
    %v92 = vld [vmem:[#allocation6 + $0x30] sm:$0xff]
    %v93 = vld [vmem:[#allocation6 + $0x38] sm:$0xff]
    %v94 = vld [vmem:[#allocation6 + $0x40] sm:$0xff]
    %v95 = vld [vmem:[#allocation6 + $0x48] sm:$0xff]
    %v96 = vld [vmem:[#allocation6 + $0x50] sm:$0xff]
    %v97 = vld [vmem:[#allocation6 + $0x58] sm:$0xff]
    %v98 = vld [vmem:[#allocation6 + $0x60] sm:$0xff]
    %v99 = vld [vmem:[#allocation6 + $0x68] sm:$0xff]
    %v100 = vld [vmem:[#allocation6 + $0x70] sm:$0xff]
    %v101 = vld [vmem:[#allocation6 + $0x78] sm:$0xff]
    %102 = vmatprep.subr.mxu0 0.0
    %103 = vmatpush1.msra.mxu0 %v101
    %104 = vmatprep.subr.mxu0 0.0
    %105 = vmatpush1.msra.mxu0 %v100
    %106 = vmatprep.subr.mxu0 0.0
    %107 = vmatpush1.msra.mxu0 %v99
    %108 = vmatprep.subr.mxu0 0.0
    %109 = vmatpush1.msra.mxu0 %v98
    %110 = vmatprep.subr.mxu0 0.0
    %111 = vmatpush1.msra.mxu0 %v97
    %112 = vmatprep.subr.mxu0 0.0
    %113 = vmatpush1.msra.mxu0 %v96
    %114 = vmatprep.subr.mxu0 0.0
    %115 = vmatpush1.msra.mxu0 %v95
    %116 = vmatprep.subr.mxu0 0.0
    %117 = vmatpush1.msra.mxu0 %v94
    %118 = vmatprep.subr.mxu0 0.0
    %119 = vmatpush1.msra.mxu0 %v93
    %120 = vmatprep.subr.mxu0 0.0
    %121 = vmatpush1.msra.mxu0 %v92
    %122 = vmatprep.subr.mxu0 0.0
    %123 = vmatpush1.msra.mxu0 %v91
    %124 = vmatprep.subr.mxu0 0.0
    %125 = vmatpush1.msra.mxu0 %v90
    %126 = vmatprep.subr.mxu0 0.0
    %127 = vmatpush1.msra.mxu0 %v89
    %128 = vmatprep.subr.mxu0 0.0
    %129 = vmatpush1.msra.mxu0 %v88
    %130 = vmatprep.subr.mxu0 0.0
    %131 = vmatpush1.msra.mxu0 %v87
    %132 = vmatprep.subr.mxu0 0.0
    %133 = vmatpush1.msra.mxu0 %v86
    %134 = vmatprep.subr.mxu0 0.0
    %135 = vmatpush2.msra.mxu0 0.0
    %136 = vmatprep.subr.mxu0 0.0
    %137 = vmatpush2.msra.mxu0 0.0
    %138 = vmatprep.subr.mxu0 0.0
    %139 = vmatpush2.msra.mxu0 0.0
    %140 = vmatprep.subr.mxu0 0.0
    %141 = vmatpush2.msra.mxu0 0.0
    %142 = vmatprep.subr.mxu0 0.0
    %143 = vmatpush2.msra.mxu0 0.0
    %144 = vmatprep.subr.mxu0 0.0
    %145 = vmatpush2.msra.mxu0 0.0
    %146 = vmatprep.subr.mxu0 0.0
    %147 = vmatpush2.msra.mxu0 0.0
    %148 = vmatprep.subr.mxu0 0.0
    %149 = vmatpush2.msra.mxu0 0.0
    %150 = vmatprep.subr.mxu0 0.0
    %151 = vmatpush2.msra.mxu0 0.0
    %152 = vmatprep.subr.mxu0 0.0
    %153 = vmatpush2.msra.mxu0 0.0
    %154 = vmatprep.subr.mxu0 0.0
    %155 = vmatpush2.msra.mxu0 0.0
    %156 = vmatprep.subr.mxu0 0.0
    %157 = vmatpush2.msra.mxu0 0.0
    %158 = vmatprep.subr.mxu0 0.0
    %159 = vmatpush2.msra.mxu0 0.0
    %160 = vmatprep.subr.mxu0 0.0
    %161 = vmatpush2.msra.mxu0 0.0
    %162 = vmatprep.subr.mxu0 0.0
    %163 = vmatpush2.msra.mxu0 0.0
    %164 = vmatprep.subr.mxu0 0.0
    %165 = vmatpush2.msra.mxu0 0.0
    %166 = vmatprep.mubr.f32.mxu0 0.0
    %167 = vmatmul.mubr.f32.gmra.mxu0 %v84
    %v168 = vpop.f32.mrf.mxu0
    %v169 = vadd.f32 0.0, %v168
    %v170 = vpop.f32.mrf.mxu0
    %171 = vdwg.mxu0
    %v172 = vadd.f32 %v85, %v169
    %173 = vst [vmem:[#allocation2] sm:$0xff] %v172
    // Predicated region
    $region34: #{tpu_custom_call.1} parent=1 // pred_check
      %p174 = pneg %p67
    $region35: #{tpu_custom_call.1} parent=1 // pred_check_branch
      %176 = sbr.rel (%p174) target = $region37
    $region36: #{tpu_custom_call.1} parent=1 // pred_region
      %v177 = vld [vmem:[#allocation2] sm:$0xff]
      %v178 = vld [vmem:[#allocation8] sm:$0xff]
      %v179 = vld [vmem:[#allocation8 + $0x8] sm:$0xff]
      %v180 = vld [vmem:[#allocation8 + $0x10] sm:$0xff]
      %v181 = vld [vmem:[#allocation8 + $0x18] sm:$0xff]
      %v182 = vld [vmem:[#allocation8 + $0x20] sm:$0xff]
      %v183 = vld [vmem:[#allocation8 + $0x28] sm:$0xff]
      %v184 = vld [vmem:[#allocation8 + $0x30] sm:$0xff]
      %v185 = vld [vmem:[#allocation8 + $0x38] sm:$0xff]
      %v186 = vld [vmem:[#allocation8 + $0x40] sm:$0xff]
      %v187 = vld [vmem:[#allocation8 + $0x48] sm:$0xff]
      %v188 = vld [vmem:[#allocation8 + $0x50] sm:$0xff]
      %v189 = vld [vmem:[#allocation8 + $0x58] sm:$0xff]
      %v190 = vld [vmem:[#allocation8 + $0x60] sm:$0xff]
      %v191 = vld [vmem:[#allocation8 + $0x68] sm:$0xff]
      %v192 = vld [vmem:[#allocation8 + $0x70] sm:$0xff]
      %v193 = vld [vmem:[#allocation8 + $0x78] sm:$0xff]
      %p194 = scmp.eq.s32.totalorder 0, 0
      %v195 = vld [vmem:[%s3] sm:$0x1]
      %s196 = scalar_select %p194, 1, 0
      %v197 = vstv %s196
      %vm198 = vcmp.eq.s32.totalorder %v197, 1
      %v199 = vsel %vm198, %v195, 0.0
      %v201 = vlaneseq
      %v202 = vshrl.u32 %v201, 7
      %v203 = vsub.s32 0, %v202
      %v204 = vrot.slane %v199, %v203
      %206 = vmatprep.subr.mxu0 0.0
      %207 = vmatpush1.msra.mxu0 %v193
      %208 = vmatprep.subr.mxu0 0.0
      %209 = vmatpush1.msra.mxu0 %v192
      %210 = vmatprep.subr.mxu0 0.0
      %211 = vmatpush1.msra.mxu0 %v191
      %212 = vmatprep.subr.mxu0 0.0
      %213 = vmatpush1.msra.mxu0 %v190
      %214 = vmatprep.subr.mxu0 0.0
      %215 = vmatpush1.msra.mxu0 %v189
      %216 = vmatprep.subr.mxu0 0.0
      %217 = vmatpush1.msra.mxu0 %v188
      %218 = vmatprep.subr.mxu0 0.0
      %219 = vmatpush1.msra.mxu0 %v187
      %220 = vmatprep.subr.mxu0 0.0
      %221 = vmatpush1.msra.mxu0 %v186
      %222 = vmatprep.subr.mxu0 0.0
      %223 = vmatpush1.msra.mxu0 %v185
      %224 = vmatprep.subr.mxu0 0.0
      %225 = vmatpush1.msra.mxu0 %v184
      %226 = vmatprep.subr.mxu0 0.0
      %227 = vmatpush1.msra.mxu0 %v183
      %228 = vmatprep.subr.mxu0 0.0
      %229 = vmatpush1.msra.mxu0 %v182
      %230 = vmatprep.subr.mxu0 0.0
      %231 = vmatpush1.msra.mxu0 %v181
      %232 = vmatprep.subr.mxu0 0.0
      %233 = vmatpush1.msra.mxu0 %v180
      %234 = vmatprep.subr.mxu0 0.0
      %235 = vmatpush1.msra.mxu0 %v179
      %236 = vmatprep.subr.mxu0 0.0
      %237 = vmatpush1.msra.mxu0 %v178
      %238 = vmatprep.subr.mxu0 0.0
      %239 = vmatpush2.msra.mxu0 0.0
      %240 = vmatprep.subr.mxu0 0.0
      %241 = vmatpush2.msra.mxu0 0.0
      %242 = vmatprep.subr.mxu0 0.0
      %243 = vmatpush2.msra.mxu0 0.0
      %244 = vmatprep.subr.mxu0 0.0
      %245 = vmatpush2.msra.mxu0 0.0
      %246 = vmatprep.subr.mxu0 0.0
      %247 = vmatpush2.msra.mxu0 0.0
      %248 = vmatprep.subr.mxu0 0.0
      %249 = vmatpush2.msra.mxu0 0.0
      %250 = vmatprep.subr.mxu0 0.0
      %251 = vmatpush2.msra.mxu0 0.0
      %252 = vmatprep.subr.mxu0 0.0
      %253 = vmatpush2.msra.mxu0 0.0
      %254 = vmatprep.subr.mxu0 0.0
      %255 = vmatpush2.msra.mxu0 0.0
      %256 = vmatprep.subr.mxu0 0.0
      %257 = vmatpush2.msra.mxu0 0.0
      %258 = vmatprep.subr.mxu0 0.0
      %259 = vmatpush2.msra.mxu0 0.0
      %260 = vmatprep.subr.mxu0 0.0
      %261 = vmatpush2.msra.mxu0 0.0
      %262 = vmatprep.subr.mxu0 0.0
      %263 = vmatpush2.msra.mxu0 0.0
      %264 = vmatprep.subr.mxu0 0.0
      %265 = vmatpush2.msra.mxu0 0.0
      %266 = vmatprep.subr.mxu0 0.0
      %267 = vmatpush2.msra.mxu0 0.0
      %268 = vmatprep.subr.mxu0 0.0
      %269 = vmatpush2.msra.mxu0 0.0
      %270 = vmatprep.mubr.f32.mxu0 0.0
      %271 = vmatmul.mubr.f32.gmra.mxu0 %v177
      %v272 = vpop.f32.mrf.mxu0
      %v273 = vadd.f32 %v204, %v272
      %v274 = vpop.f32.mrf.mxu0
      %275 = vdwg.mxu0
      %276 = vst [vmem:[#allocation9] sm:$0xff] %v273
    $region37: #{tpu_custom_call.1} parent=1 // pred_fallthru
      _
    // Predicated region
    $region38: #{tpu_custom_call.1} parent=1 // pred_check
      _
    $region39: #{tpu_custom_call.1} parent=1 // pred_check_branch
      %278 = sbr.rel (0) target = $region41
    $region40: #{tpu_custom_call.1} parent=1 // pred_region
      %s280 = ssub.s32 128, 128
      %281 = vsyncadd [#allocation5], %s280
      %s283 = sshll.u32 [#allocation9], 4
      %s284 = int_to_ptr.vmem [resolvable:$true] %s283
      %286 = dma.vmem_to_hbm [thread:$0]  %s284, 128, %s4, [#allocation5]
    $region41: #{tpu_custom_call.1} parent=1 // pred_fallthru
      _
    // Predicated region
    $region42: #{tpu_custom_call.1} parent=1 // pred_check
      _
    $region43: #{tpu_custom_call.1} parent=1 // pred_check_branch
      %288 = sbr.rel (0) target = $region45
    $region44: #{tpu_custom_call.1} parent=1 // pred_region
      %289 = dma.done [#allocation5], 128
    $region45: #{tpu_custom_call.1} parent=1 // pred_fallthru
      _
    %290 = vsyncpa [#allocation4], 1
    %291 = vsyncpa [#allocation7], 1
    %292 = vsyncpa [#allocation5], 1

</llo_original>
